<compile_context>
chip_gen: v7x
topology: tpu7x:2x2x1
jax: 0.10.0
libtpu: 0.0.40
codegen_flags: <defaults>
</compile_context>

<pallas_src>
import functools

import jax
import jax.numpy as jnp
from jax.experimental import pallas as pl
from jax.experimental.pallas import tpu as pltpu

_SMALL_BYTES = 1 << 20  # below ~1 MiB, kernel dispatch costs more than the copy


def _copy_kernel(x_ref, o_ref):
    # "Forward" of BaseModel: pass the input tile through unchanged.
    o_ref[...] = x_ref[...]


def _vmem_capacity_bytes() -> int:
    try:
        return int(pltpu.get_tpu_info().vmem_capacity_bytes)
    except Exception:
        # Conservative fallback: the default scoped-VMEM limit.
        return 32 * 1024 * 1024


@functools.lru_cache(maxsize=None)
def _build_copy(rows: int, cols: int, tr: int, dtype_name: str, vmem_limit: int):
    dtype = jnp.dtype(dtype_name)
    call = pl.pallas_call(
        _copy_kernel,
        out_shape=jax.ShapeDtypeStruct((rows, cols), dtype),
        grid=(pl.cdiv(rows, tr),),
        in_specs=[pl.BlockSpec((tr, cols), lambda i: (i, 0))],
        out_specs=pl.BlockSpec((tr, cols), lambda i: (i, 0)),
        compiler_params=pltpu.CompilerParams(
            # Row-tile loop can be sharded across both TensorCores on v7x;
            # neutral on v5e/v6e (single TC).
            dimension_semantics=("parallel",),
            vmem_limit_bytes=vmem_limit,
        ),
    )
    # jit removes eager Python dispatch overhead per call; no aliasing/donation
    # is used, so callers can keep reading the original input safely.
    return jax.jit(call)


def pallas_identity_copy(x: jax.Array, *, force: bool = False) -> jax.Array:
    """Lane-dense, row-tiled Pallas pass-through copy of `x` (scaffolding)."""
    orig_shape = x.shape
    total = x.size
    itemsize = jnp.dtype(x.dtype).itemsize

    # Small-size short-circuit: tiny tensors never pay Pallas dispatch + DMA
    # prologue for a few-KiB copy (override with force=True for testing).
    if not force and total * itemsize < _SMALL_BYTES:
        return x

    # If the array cannot be folded into a lane-dense (multiple-of-128 last
    # dim) 2-D view, the cheapest correct identity is to return the input.
    if total == 0 or total % 128 !=  0:
        return x

    # Minimum sublane quantum: 8 rows for 4-byte, 16 for 2-byte, 32 for 1-byte
    # dtypes (int8/fp8 tiles are (32, 128)).
    sublane = max(8, 32 // itemsize)

    # Widest lane-dense column count (multiple of 128) that divides the flat
    # size while keeping at least `sublane` rows: unmasked vst + fewer steps.
    cols = 128
    for cand in (32768, 16384, 8192, 4096, 2048, 1024, 512, 256, 128):
        if total % cand == 0 and total // cand >= sublane:
            cols = cand
            break
    rows = total // cols

    # VMEM budget derived from the queried chip capacity (128 MiB on v5e/v6e,
    # 64 MiB on v7x); 2 in + 2 out double-buffered tiles must fit.
    cap = _vmem_capacity_bytes()
    budget = (cap * 3) // 4
    max_tile_bytes = max(1, budget // 4)
    max_tr = max(sublane, max_tile_bytes // max(1, cols * itemsize))

    if rows <= sublane:
        tr = rows  # full-extent block is always legal
    else:
        tr = min(rows, max_tr)
        tr = max(sublane, (tr // sublane) * sublane)
        # Ensure >= 2 grid steps so v7x's second TensorCore participates.
        if pl.cdiv(rows, tr) < 2 and rows >= 2 * sublane:
            tr = max(sublane, ((tr // 2) // sublane) * sublane)

    x2d = x.reshape(rows, cols)  # glue reshape in plain JAX
    out2d = _build_copy(rows, cols, tr, str(x2d.dtype), int(budget))(x2d)
    return out2d.reshape(orig_shape)


def base_model_forward(*inputs):
    """Pallas equivalent of BaseModel.forward(*inputs).

    The base class defines no math; the fastest correct implementation on every
    TPU generation is the zero-cost identity (no kernel launch, no HBM traffic).
    """
    if len(inputs) == 1:
        return inputs[0]
    return inputs


if __name__ == "__main__":
    key = jax.random.PRNGKey(0)
    # Small NCHW input consistent with typical vision inputs fed to BaseModel
    # subclasses: batch=2, channels=4, spatial=16x16.
    shape = (2, 4, 16, 16)
    x = jax.random.normal(key, shape, dtype=jnp.float32)

    # Production path: free identity, no kernel launch.
    y = base_model_forward(x)
    jax.block_until_ready(y)

    # Scaffolding path: run the Pallas pass-through kernel once on TPU
    # (force=True bypasses the small-size short-circuit for this 8 KiB demo).
    y_kernel = pallas_identity_copy(x, force=True)
    jax.block_until_ready(y_kernel)

    # Compare against a freshly regenerated (identical) input so the check is
    # independent of how the original buffer is handled.
    expected = jax.random.normal(key, shape, dtype=jnp.float32)

    assert y.shape == shape and y.dtype == jnp.float32
    assert y_kernel.shape == shape and y_kernel.dtype == jnp.float32
    assert bool(jnp.allclose(y, expected))
    assert bool(jnp.allclose(y_kernel, expected))
    print("KERNEL_OK")
</pallas_src>

<mosaic_0001>
module attributes {stable_mosaic.version = 11 : i64} {
  func.func @_copy_kernel(%arg0: i32, %arg1: memref<8x256xf32, #tpu.memory_space<vmem>>, %arg2: memref<8x256xf32, #tpu.memory_space<vmem>>) attributes {dimension_semantics = [#tpu.dimension_semantics<parallel>], iteration_bounds = array<i64: 1>, scalar_prefetch = 0 : i64, scratch_operands = 0 : i64, tpu.core_type = #tpu.core_type<tc>, window_params = [{transform_indices = @transform_0, window_bounds = array<i64: 8, 256>}, {transform_indices = @transform_1, window_bounds = array<i64: 8, 256>}]} {
    %c0 = arith.constant 0 : index
    %c0_0 = arith.constant 0 : index
    %0 = vector.load %arg1[%c0, %c0_0] : memref<8x256xf32, #tpu.memory_space<vmem>>, vector<8x256xf32>
    %c0_1 = arith.constant 0 : index
    %c0_2 = arith.constant 0 : index
    %1 = vector.load %arg2[%c0_1, %c0_2] : memref<8x256xf32, #tpu.memory_space<vmem>>, vector<8x256xf32>
    tpu.vector_store %arg2[%c0_1, %c0_2], %0 {strides = array<i32>} : memref<8x256xf32, #tpu.memory_space<vmem>>, vector<8x256xf32>,
    return
  }
  func.func @transform_0(%arg0: i32) -> (i32, i32) {
    %c0_i32 = arith.constant 0 : i32
    %c0_i32_0 = arith.constant 0 : i32
    return %arg0, %c0_i32 : i32, i32
  }
  func.func @transform_1(%arg0: i32) -> (i32, i32) {
    %c0_i32 = arith.constant 0 : i32
    %c0_i32_0 = arith.constant 0 : i32
    return %arg0, %c0_i32 : i32, i32
  }
}

</mosaic_0001>

<llo_original>
// kernel: tpu_custom_call.1
$region0: #{tpu_custom_call.1}
  #allocation0 [shape = 'u32[]', space=smem, size = 0x4, offset = 0x4, fixed_abs, tag = 'smem constant byte address 0x4 - core index']
  #allocation1 [shape = 'u32[144,128]{1,0:T(1,128)}', space=vmem, size = 0x12000, scoped, tag = 'internal scratch']
  %s0 = inlined_call_operand.hbm [shape: f32[8,256], index: 0, kind: input, shape index: {}]
  %s1 = inlined_call_operand.hbm [shape: f32[8,256], index: 1, kind: output, shape index: {}]
  %s2 = sld [smem:[#allocation0]]
  $region18: #{tpu_custom_call.1} parent=0
    _
  %s4 = ssub.s32 1, %s2
  %s5 = scalar_select 0, %s4, %s2
  $region1: #{tpu_custom_call.1} parent=0
    #allocation2 [shape = 'u8[8192]{0}', space=vmem, size = 0x2000, scoped, tag = 'input window, operand 0, single buffered']
    #allocation3 [shape = 's32[1]{0}', space=sflag, size = 0x4, scoped, tag = 'scoped memory for tpu_custom_call.1']
    #allocation4 [shape = 's32[1]{0}', space=sflag, size = 0x4, scoped, tag = 'scoped memory for tpu_custom_call.1']
    #allocation5 [shape = 'u8[8192]{0}', space=vmem, size = 0x2000, scoped, tag = 'output window, operand 0, single buffered']
    %6 = vsyncpa [#allocation3], 0
    %7 = vsyncpa [#allocation4], 0
    // Predicated region
    $region2: #{tpu_custom_call.1} parent=1 // pred_check
      _
    $region3: #{tpu_custom_call.1} parent=1 // pred_check_branch
      %9 = sbr.rel (0) target = $region5
    $region4: #{tpu_custom_call.1} parent=1 // pred_region
      %s11 = ssub.s32 256, 256
      %12 = vsyncadd [#allocation3], %s11
      %s14 = sshll.u32 [#allocation2], 4
      %s15 = int_to_ptr.vmem [resolvable:$true] %s14
      %17 = dma.hbm_to_vmem [thread:$0]  %s0, 256, %s15, [#allocation3]
    $region5: #{tpu_custom_call.1} parent=1 // pred_fallthru
      _
    // Predicated region
    $region6: #{tpu_custom_call.1} parent=1 // pred_check
      _
    $region7: #{tpu_custom_call.1} parent=1 // pred_check_branch
      %19 = sbr.rel (0) target = $region9
    $region8: #{tpu_custom_call.1} parent=1 // pred_region
      %20 = dma.done [#allocation3], 256
    $region9: #{tpu_custom_call.1} parent=1 // pred_fallthru
      _
    %v21 = vld [vmem:[#allocation2] sm:$0xff]
    %v22 = vld [vmem:[#allocation2 + $0x8] sm:$0xff]
    %23 = vst [vmem:[#allocation5] sm:$0xff] %v21
    %24 = vst [vmem:[#allocation5 + $0x8] sm:$0xff] %v22
    // Predicated region
    $region10: #{tpu_custom_call.1} parent=1 // pred_check
      _
    $region11: #{tpu_custom_call.1} parent=1 // pred_check_branch
      %26 = sbr.rel (0) target = $region13
    $region12: #{tpu_custom_call.1} parent=1 // pred_region
      %s28 = ssub.s32 256, 256
      %29 = vsyncadd [#allocation4], %s28
      %s31 = sshll.u32 [#allocation5], 4
      %s32 = int_to_ptr.vmem [resolvable:$true] %s31
      %34 = dma.vmem_to_hbm [thread:$0]  %s32, 256, %s1, [#allocation4]
    $region13: #{tpu_custom_call.1} parent=1 // pred_fallthru
      _
    // Predicated region
    $region14: #{tpu_custom_call.1} parent=1 // pred_check
      _
    $region15: #{tpu_custom_call.1} parent=1 // pred_check_branch
      %36 = sbr.rel (0) target = $region17
    $region16: #{tpu_custom_call.1} parent=1 // pred_region
      %37 = dma.done [#allocation4], 256
    $region17: #{tpu_custom_call.1} parent=1 // pred_fallthru
      _
    %38 = vsyncpa [#allocation3], 1
    %39 = vsyncpa [#allocation4], 1

</llo_original>
